<compile_context>
chip_gen: v7x
topology: tpu7x:2x2x1
jax: 0.10.0
libtpu: 0.0.40
codegen_flags: <defaults>
</compile_context>

<pallas_src>
from functools import partial

import numpy as np
import jax
import jax.numpy as jnp
from jax.experimental import pallas as pl
from jax.experimental.pallas import tpu as pltpu  # noqa: F401  (TPU backend)

BN_EPS = 1e-5
LANE = 128
SUBLANE = 8


def _round_up(n, m):
    return ((n + m - 1) // m) * m


def _fused_batchnorm(h, gamma, beta):
    """Training-mode BatchNorm1d: centered variance + fused scale/shift.

    mean / biased variance over the batch axis; normalization is folded into
    `(h - mean) * scale + beta` with scale = gamma * rsqrt(var + eps) computed
    on a (1, D) row. Zero-padded feature columns (gamma = beta = 0 there) stay
    exactly 0.
    """
    inv_b = 1.0 / h.shape[0]
    mean = jnp.sum(h, axis=0, keepdims=True) * inv_b
    c = h - mean
    var = jnp.sum(c * c, axis=0, keepdims=True) * inv_b
    scale = gamma * jax.lax.rsqrt(var + BN_EPS)
    return c * scale + beta


def actor_kernel(x_ref, w_ref, v_ref, o_ref, *, k1, d):
    x = x_ref[...]                       # (B, k1) raw (padded-to-sublane) state
    v = v_ref[...]                       # (8, D) packed parameter rows
    b1, g1, be1 = v[0:1], v[1:2], v[2:3]
    b2, g2, be2 = v[3:4], v[4:5], v[5:6]
    b3 = v[6:7]

    # Sublane-aligned static slices into the packed weight slab (copy-free).
    w1 = w_ref[0:k1, :]                  # (k1, D)
    w2 = w_ref[k1:k1 + d, :]             # (D, D)
    w3 = w_ref[k1 + d:k1 + 2 * d, :]     # (D, D)

    # fc1 (K = k1) -> relu -> bn1
    h = jnp.dot(x, w1, preferred_element_type=jnp.float32) + b1
    h = _fused_batchnorm(jnp.maximum(h, 0.0), g1, be1)

    # fc2 -> relu -> bn2
    h = jnp.dot(h, w2, preferred_element_type=jnp.float32) + b2
    h = _fused_batchnorm(jnp.maximum(h, 0.0), g2, be2)

    # fc3 -> tanh
    out = jnp.dot(h, w3, preferred_element_type=jnp.float32) + b3
    o_ref[...] = jnp.tanh(out)


def pack_actor_params(params):
    """Pack the 10 parameter arrays into one weight slab + one vector slab.

    Weight slab: (k1 + 2*D, D) f32 with
        rows [0:k1]        = w1 (K packed to round_up(state_size, 8))
        rows [k1:k1+D]     = w2 (K kept at D so the fc2 LHS needs no lane slice)
        rows [k1+D:k1+2*D] = w3
    Vector slab: (8, D) rows = [b1, g1, be1, b2, g2, be2, b3, 0].
    D = max(h1, h2, action) rounded up to a multiple of 128 (lane-dense).
    """
    w1, w2, w3 = params["w1"], params["w2"], params["w3"]
    S, h1 = w1.shape
    _, h2 = w2.shape
    _, A = w3.shape
    D = _round_up(max(h1, h2, A), LANE)
    k1 = _round_up(S, SUBLANE)

    w_slab = jnp.zeros((k1 + 2 * D, D), jnp.float32)
    w_slab = w_slab.at[:S, :h1].set(w1)
    w_slab = w_slab.at[k1:k1 + h1, :h2].set(w2)
    w_slab = w_slab.at[k1 + D:k1 + D + h2, :A].set(w3)

    v_slab = jnp.zeros((8, D), jnp.float32)
    v_slab = v_slab.at[0, :h1].set(params["b1"].reshape(-1))
    v_slab = v_slab.at[1, :h1].set(params["g1"].reshape(-1))
    v_slab = v_slab.at[2, :h1].set(params["be1"].reshape(-1))
    v_slab = v_slab.at[3, :h2].set(params["b2"].reshape(-1))
    v_slab = v_slab.at[4, :h2].set(params["g2"].reshape(-1))
    v_slab = v_slab.at[5, :h2].set(params["be2"].reshape(-1))
    v_slab = v_slab.at[6, :A].set(params["b3"].reshape(-1))
    return w_slab, v_slab


@partial(jax.jit, static_argnames=("action_size",))
def actor_forward(state, w_slab, v_slab, action_size):
    """state: (B, S) f32; w_slab/v_slab from pack_actor_params.

    One jitted executable: (tiny) state pad, the Pallas kernel, and the output
    slice all fuse into a single dispatch.
    """
    B, S = state.shape
    k_total, D = w_slab.shape
    k1 = k_total - 2 * D

    # Pad state columns up to the sublane-aligned K of w1 (no-op when S == k1);
    # padded columns hit zero weight rows, so the math is unchanged.
    if S < k1:
        state = jnp.pad(state, ((0, 0), (0, k1 - S)))

    cost = pl.CostEstimate(
        flops=2 * B * D * (k1 + 2 * D),
        transcendentals=B * D + 2 * D,                 # tanh + rsqrt rows
        bytes_accessed=4 * (B * k1 + k_total * D + 8 * D + B * D),
    )

    out = pl.pallas_call(
        partial(actor_kernel, k1=k1, d=D),
        out_shape=jax.ShapeDtypeStruct((B, D), jnp.float32),
        grid=(),
        in_specs=[
            pl.BlockSpec((B, k1), lambda: (0, 0)),
            pl.BlockSpec((k_total, D), lambda: (0, 0)),
            pl.BlockSpec((8, D), lambda: (0, 0)),
        ],
        out_specs=pl.BlockSpec((B, D), lambda: (0, 0)),
        cost_estimate=cost,
    )(state, w_slab, v_slab)

    return out[:, :action_size]


def init_actor_params(key, state_size, action_size, hidden_layer_sizes=(32, 32)):
    """Deterministic init mirroring the PyTorch module's reset_parameters().

    Note: hidden_init uses weight.size()[0] == out_features as 'fan_in'
    (faithfully reproducing the reference code). Linear biases use PyTorch's
    default uniform(-1/sqrt(in_features), 1/sqrt(in_features)).
    """
    h1, h2 = hidden_layer_sizes
    ks = jax.random.split(key, 6)

    def uni(k, shape, lim):
        return jax.random.uniform(k, shape, jnp.float32, -lim, lim)

    lim1 = 1.0 / np.sqrt(h1)          # fc1.weight.size()[0] == h1
    lim2 = 1.0 / np.sqrt(h2)          # fc2.weight.size()[0] == h2
    lim3 = 0.003

    params = {
        # weights stored (in, out)
        "w1": uni(ks[0], (state_size, h1), lim1),
        "b1": uni(ks[1], (1, h1), 1.0 / np.sqrt(state_size)),
        "w2": uni(ks[2], (h1, h2), lim2),
        "b2": uni(ks[3], (1, h2), 1.0 / np.sqrt(h1)),
        "w3": uni(ks[4], (h2, action_size), lim3),
        "b3": uni(ks[5], (1, action_size), 1.0 / np.sqrt(h2)),
        # BatchNorm1d affine params (gamma=1, beta=0 at init)
        "g1": jnp.ones((1, h1), jnp.float32),
        "be1": jnp.zeros((1, h1), jnp.float32),
        "g2": jnp.ones((1, h2), jnp.float32),
        "be2": jnp.zeros((1, h2), jnp.float32),
    }
    return params


def _reference_forward(state, params):
    """Pure-JAX reference matching the PyTorch module (training-mode BN)."""
    def bn(h, g, b):
        mean = jnp.mean(h, axis=0, keepdims=True)
        var = jnp.mean((h - mean) ** 2, axis=0, keepdims=True)
        return (h - mean) * jax.lax.rsqrt(var + BN_EPS) * g + b

    h = jnp.maximum(state @ params["w1"] + params["b1"], 0.0)
    h = bn(h, params["g1"], params["be1"])
    h = jnp.maximum(h @ params["w2"] + params["b2"], 0.0)
    h = bn(h, params["g2"], params["be2"])
    return jnp.tanh(h @ params["w3"] + params["b3"])


if __name__ == "__main__":
    key = jax.random.PRNGKey(0)
    k_param, k_state = jax.random.split(key)

    batch = 8
    state_size = 16
    action_size = 4
    hidden = (32, 32)

    params = init_actor_params(k_param, state_size, action_size, hidden)
    w_slab, v_slab = pack_actor_params(params)          # pack once, reuse per call
    state = jax.random.normal(k_state, (batch, state_size), jnp.float32)

    actions = actor_forward(state, w_slab, v_slab, action_size)
    jax.block_until_ready(actions)

    assert actions.shape == (batch, action_size)
    assert bool(jnp.all(jnp.isfinite(actions)))
    assert bool(jnp.all(jnp.abs(actions) <= 1.0))

    # Quiet correctness check against the pure-JAX reference.
    ref = _reference_forward(state, params)
    np.testing.assert_allclose(np.asarray(actions), np.asarray(ref),
                               rtol=1e-5, atol=2e-5)

    print("KERNEL_OK")
</pallas_src>

<mosaic_0001>
module attributes {stable_mosaic.version = 11 : i64} {
  func.func @actor_kernel(%arg0: memref<8x16xf32, #tpu.memory_space<vmem>>, %arg1: memref<272x128xf32, #tpu.memory_space<vmem>>, %arg2: memref<8x128xf32, #tpu.memory_space<vmem>>, %arg3: memref<8x128xf32, #tpu.memory_space<vmem>>) attributes {dimension_semantics = [], scalar_prefetch = 0 : i64, scratch_operands = 0 : i64, tpu.core_type = #tpu.core_type<tc>} {
    %c0 = arith.constant 0 : index
    %c0_0 = arith.constant 0 : index
    %0 = vector.load %arg0[%c0, %c0_0] : memref<8x16xf32, #tpu.memory_space<vmem>>, vector<8x16xf32>
    %c0_1 = arith.constant 0 : index
    %c0_2 = arith.constant 0 : index
    %1 = vector.load %arg2[%c0_1, %c0_2] : memref<8x128xf32, #tpu.memory_space<vmem>>, vector<8x128xf32>
    %2 = vector.extract_strided_slice %1 {offsets = [0, 0], sizes = [1, 128], strides = [1, 1]} : vector<8x128xf32> to vector<1x128xf32>
    %3 = vector.extract_strided_slice %1 {offsets = [1, 0], sizes = [1, 128], strides = [1, 1]} : vector<8x128xf32> to vector<1x128xf32>
    %4 = vector.extract_strided_slice %1 {offsets = [2, 0], sizes = [1, 128], strides = [1, 1]} : vector<8x128xf32> to vector<1x128xf32>
    %5 = vector.extract_strided_slice %1 {offsets = [3, 0], sizes = [1, 128], strides = [1, 1]} : vector<8x128xf32> to vector<1x128xf32>
    %6 = vector.extract_strided_slice %1 {offsets = [4, 0], sizes = [1, 128], strides = [1, 1]} : vector<8x128xf32> to vector<1x128xf32>
    %7 = vector.extract_strided_slice %1 {offsets = [5, 0], sizes = [1, 128], strides = [1, 1]} : vector<8x128xf32> to vector<1x128xf32>
    %8 = vector.extract_strided_slice %1 {offsets = [6, 0], sizes = [1, 128], strides = [1, 1]} : vector<8x128xf32> to vector<1x128xf32>
    %c0_3 = arith.constant 0 : index
    %c0_4 = arith.constant 0 : index
    %9 = vector.load %arg1[%c0_3, %c0_4] : memref<272x128xf32, #tpu.memory_space<vmem>>, vector<16x128xf32>
    %c16 = arith.constant 16 : index
    %c0_5 = arith.constant 0 : index
    %10 = vector.load %arg1[%c16, %c0_5] : memref<272x128xf32, #tpu.memory_space<vmem>>, vector<128x128xf32>
    %c144 = arith.constant 144 : index
    %c0_6 = arith.constant 0 : index
    %11 = vector.load %arg1[%c144, %c0_6] : memref<272x128xf32, #tpu.memory_space<vmem>>, vector<128x128xf32>
    %cst = arith.constant dense<0.000000e+00> : vector<8x128xf32>
    %12 = tpu.matmul %0, %9, %cst {dimension_numbers = #tpu.dot_dimension_numbers<[1], [0], [0], [1], [0, 0, 1, 1], [], []>} : vector<8x16xf32>, vector<16x128xf32>, vector<8x128xf32> -> vector<8x128xf32>
    %13 = vector.broadcast %2 : vector<1x128xf32> to vector<8x128xf32>
    %14 = arith.addf %12, %13 : vector<8x128xf32>
    %cst_7 = arith.constant 0.000000e+00 : f32
    %15 = vector.broadcast %cst_7 : f32 to vector<8x128xf32>
    %16 = arith.maximumf %14, %15 : vector<8x128xf32>
    %cst_8 = arith.constant dense<0.000000e+00> : vector<128xf32>
    %17 = vector.multi_reduction <add>, %16, %cst_8 [0] : vector<8x128xf32> to vector<128xf32>
    %18 = vector.shape_cast %17 : vector<128xf32> to vector<1x128xf32>
    %cst_9 = arith.constant 1.250000e-01 : f32
    %19 = vector.broadcast %cst_9 : f32 to vector<1x128xf32>
    %20 = arith.mulf %18, %19 : vector<1x128xf32>
    %21 = vector.broadcast %20 : vector<1x128xf32> to vector<8x128xf32>
    %22 = arith.subf %16, %21 : vector<8x128xf32>
    %23 = arith.mulf %22, %22 : vector<8x128xf32>
    %cst_10 = arith.constant dense<0.000000e+00> : vector<128xf32>
    %24 = vector.multi_reduction <add>, %23, %cst_10 [0] : vector<8x128xf32> to vector<128xf32>
    %25 = vector.shape_cast %24 : vector<128xf32> to vector<1x128xf32>
    %cst_11 = arith.constant 1.250000e-01 : f32
    %26 = vector.broadcast %cst_11 : f32 to vector<1x128xf32>
    %27 = arith.mulf %25, %26 : vector<1x128xf32>
    %cst_12 = arith.constant 9.99999974E-6 : f32
    %28 = vector.broadcast %cst_12 : f32 to vector<1x128xf32>
    %29 = arith.addf %27, %28 : vector<1x128xf32>
    %30 = math.rsqrt %29 : vector<1x128xf32>
    %31 = arith.mulf %3, %30 : vector<1x128xf32>
    %32 = vector.broadcast %31 : vector<1x128xf32> to vector<8x128xf32>
    %33 = arith.mulf %22, %32 : vector<8x128xf32>
    %34 = vector.broadcast %4 : vector<1x128xf32> to vector<8x128xf32>
    %35 = arith.addf %33, %34 : vector<8x128xf32>
    %cst_13 = arith.constant dense<0.000000e+00> : vector<8x128xf32>
    %36 = tpu.matmul %35, %10, %cst_13 {dimension_numbers = #tpu.dot_dimension_numbers<[1], [0], [0], [1], [0, 0, 1, 1], [], []>} : vector<8x128xf32>, vector<128x128xf32>, vector<8x128xf32> -> vector<8x128xf32>
    %37 = vector.broadcast %5 : vector<1x128xf32> to vector<8x128xf32>
    %38 = arith.addf %36, %37 : vector<8x128xf32>
    %cst_14 = arith.constant 0.000000e+00 : f32
    %39 = vector.broadcast %cst_14 : f32 to vector<8x128xf32>
    %40 = arith.maximumf %38, %39 : vector<8x128xf32>
    %cst_15 = arith.constant dense<0.000000e+00> : vector<128xf32>
    %41 = vector.multi_reduction <add>, %40, %cst_15 [0] : vector<8x128xf32> to vector<128xf32>
    %42 = vector.shape_cast %41 : vector<128xf32> to vector<1x128xf32>
    %cst_16 = arith.constant 1.250000e-01 : f32
    %43 = vector.broadcast %cst_16 : f32 to vector<1x128xf32>
    %44 = arith.mulf %42, %43 : vector<1x128xf32>
    %45 = vector.broadcast %44 : vector<1x128xf32> to vector<8x128xf32>
    %46 = arith.subf %40, %45 : vector<8x128xf32>
    %47 = arith.mulf %46, %46 : vector<8x128xf32>
    %cst_17 = arith.constant dense<0.000000e+00> : vector<128xf32>
    %48 = vector.multi_reduction <add>, %47, %cst_17 [0] : vector<8x128xf32> to vector<128xf32>
    %49 = vector.shape_cast %48 : vector<128xf32> to vector<1x128xf32>
    %cst_18 = arith.constant 1.250000e-01 : f32
    %50 = vector.broadcast %cst_18 : f32 to vector<1x128xf32>
    %51 = arith.mulf %49, %50 : vector<1x128xf32>
    %cst_19 = arith.constant 9.99999974E-6 : f32
    %52 = vector.broadcast %cst_19 : f32 to vector<1x128xf32>
    %53 = arith.addf %51, %52 : vector<1x128xf32>
    %54 = math.rsqrt %53 : vector<1x128xf32>
    %55 = arith.mulf %6, %54 : vector<1x128xf32>
    %56 = vector.broadcast %55 : vector<1x128xf32> to vector<8x128xf32>
    %57 = arith.mulf %46, %56 : vector<8x128xf32>
    %58 = vector.broadcast %7 : vector<1x128xf32> to vector<8x128xf32>
    %59 = arith.addf %57, %58 : vector<8x128xf32>
    %cst_20 = arith.constant dense<0.000000e+00> : vector<8x128xf32>
    %60 = tpu.matmul %59, %11, %cst_20 {dimension_numbers = #tpu.dot_dimension_numbers<[1], [0], [0], [1], [0, 0, 1, 1], [], []>} : vector<8x128xf32>, vector<128x128xf32>, vector<8x128xf32> -> vector<8x128xf32>
    %61 = vector.broadcast %8 : vector<1x128xf32> to vector<8x128xf32>
    %62 = arith.addf %60, %61 : vector<8x128xf32>
    %63 = math.tanh %62 : vector<8x128xf32>
    %c0_21 = arith.constant 0 : index
    %c0_22 = arith.constant 0 : index
    %64 = vector.load %arg3[%c0_21, %c0_22] : memref<8x128xf32, #tpu.memory_space<vmem>>, vector<8x128xf32>
    tpu.vector_store %arg3[%c0_21, %c0_22], %63 {strides = array<i32>} : memref<8x128xf32, #tpu.memory_space<vmem>>, vector<8x128xf32>,
    return
  }
}

</mosaic_0001>

<llo_original>
// kernel: actor_forward.1
$region0: #{actor_forward.1}
  #allocation0 [shape = 'u32[]', space=smem, size = 0x4, offset = 0x4, fixed_abs, tag = 'smem constant byte address 0x4 - core index']
  #allocation1 [shape = 'u32[144,128]{1,0:T(1,128)}', space=vmem, size = 0x12000, scoped, tag = 'internal scratch']
  %s0 = inlined_call_operand.hbm [shape: f32[8,16], index: 0, kind: input, shape index: {}]
  %s1 = inlined_call_operand.hbm [shape: f32[272,128], index: 1, kind: input, shape index: {}]
  %s2 = inlined_call_operand.hbm [shape: f32[8,128], index: 2, kind: input, shape index: {}]
  %s3 = inlined_call_operand.vmem [shape: f32[8,128], index: 3, kind: output, shape index: {}]
  %s4 = sld [smem:[#allocation0]]
  $region34: #{actor_forward.1} parent=0
    _
  %s6 = ssub.s32 1, %s4
  %s7 = scalar_select 0, %s6, %s4
  $region1: #{actor_forward.1} parent=0
    #allocation2 [shape = 'u8[4096]{0}', space=vmem, size = 0x1000, scoped, tag = 'input window, operand 0, single buffered']
    #allocation3 [shape = 's32[1]{0}', space=sflag, size = 0x4, scoped, tag = 'scoped memory for actor_forward.1']
    #allocation4 [shape = 'u8[139264]{0}', space=vmem, size = 0x22000, scoped, tag = 'input window, operand 1, single buffered']
    #allocation5 [shape = 's32[1]{0}', space=sflag, size = 0x4, scoped, tag = 'scoped memory for actor_forward.1']
    #allocation6 [shape = 'u8[4096]{0}', space=vmem, size = 0x1000, scoped, tag = 'input window, operand 2, single buffered']
    %8 = vsyncpa [#allocation3], 0
    %9 = vsyncpa [#allocation5], 0
    // Predicated region
    $region2: #{actor_forward.1} parent=1 // pred_check
      _
    $region3: #{actor_forward.1} parent=1 // pred_check_branch
      %11 = sbr.rel (0) target = $region5
    $region4: #{actor_forward.1} parent=1 // pred_region
      %s13 = ssub.s32 128, 128
      %14 = vsyncadd [#allocation3], %s13
      %s16 = sshll.u32 [#allocation2], 4
      %s17 = int_to_ptr.vmem [resolvable:$true] %s16
      %19 = dma.hbm_to_vmem [thread:$0]  %s0, 128, %s17, [#allocation3]
    $region5: #{actor_forward.1} parent=1 // pred_fallthru
      _
    // Predicated region
    $region6: #{actor_forward.1} parent=1 // pred_check
      _
    $region7: #{actor_forward.1} parent=1 // pred_check_branch
      %21 = sbr.rel (0) target = $region9
    $region8: #{actor_forward.1} parent=1 // pred_region
      %s23 = ssub.s32 4352, 4352
      %24 = vsyncadd [#allocation5], %s23
      %s25 = sshll.u32 [#allocation4], 4
      %s26 = int_to_ptr.vmem [resolvable:$true] %s25
      %31 = dma.hbm_to_vmem [thread:$0]  %s1, 4352, %s26, [#allocation5], 128, 128, 8
    $region9: #{actor_forward.1} parent=1 // pred_fallthru
      _
    // Predicated region
    $region10: #{actor_forward.1} parent=1 // pred_check
      _
    $region11: #{actor_forward.1} parent=1 // pred_check_branch
      %33 = sbr.rel (0) target = $region13
    $region12: #{actor_forward.1} parent=1 // pred_region
      %s35 = ssub.s32 128, 128
      %36 = vsyncadd [#allocation5], %s35
      %s38 = sshll.u32 [#allocation6], 4
      %s39 = int_to_ptr.vmem [resolvable:$true] %s38
      %41 = dma.hbm_to_vmem [thread:$0]  %s2, 128, %s39, [#allocation5]
    $region13: #{actor_forward.1} parent=1 // pred_fallthru
      _
    // Predicated region
    $region14: #{actor_forward.1} parent=1 // pred_check
      _
    $region15: #{actor_forward.1} parent=1 // pred_check_branch
      %43 = sbr.rel (0) target = $region17
    $region16: #{actor_forward.1} parent=1 // pred_region
      %44 = dma.done [#allocation3], 128
    $region17: #{actor_forward.1} parent=1 // pred_fallthru
      _
    // Predicated region
    $region18: #{actor_forward.1} parent=1 // pred_check
      _
    $region19: #{actor_forward.1} parent=1 // pred_check_branch
      %46 = sbr.rel (0) target = $region21
    $region20: #{actor_forward.1} parent=1 // pred_region
      %47 = dma.done [#allocation5], 4352
    $region21: #{actor_forward.1} parent=1 // pred_fallthru
      _
    // Predicated region
    $region22: #{actor_forward.1} parent=1 // pred_check
      _
    $region23: #{actor_forward.1} parent=1 // pred_check_branch
      %49 = sbr.rel (0) target = $region25
    $region24: #{actor_forward.1} parent=1 // pred_region
      %50 = dma.done [#allocation5], 128
    $region25: #{actor_forward.1} parent=1 // pred_fallthru
      _
    %v51 = vld [vmem:[#allocation2] sm:$0xff]
    %v52 = vld [vmem:[#allocation6] sm:$0xff]
    %v53 = vld [vmem:[#allocation4] sm:$0xff]
    %v54 = vld [vmem:[#allocation4 + $0x8] sm:$0xff]
    %v55 = vld [vmem:[#allocation4 + $0x10] sm:$0xff]
    %v56 = vld [vmem:[#allocation4 + $0x18] sm:$0xff]
    %v57 = vld [vmem:[#allocation4 + $0x20] sm:$0xff]
    %v58 = vld [vmem:[#allocation4 + $0x28] sm:$0xff]
    %v59 = vld [vmem:[#allocation4 + $0x30] sm:$0xff]
    %v60 = vld [vmem:[#allocation4 + $0x38] sm:$0xff]
    %v61 = vld [vmem:[#allocation4 + $0x40] sm:$0xff]
    %v62 = vld [vmem:[#allocation4 + $0x48] sm:$0xff]
    %v63 = vld [vmem:[#allocation4 + $0x50] sm:$0xff]
    %v64 = vld [vmem:[#allocation4 + $0x58] sm:$0xff]
    %v65 = vld [vmem:[#allocation4 + $0x60] sm:$0xff]
    %v66 = vld [vmem:[#allocation4 + $0x68] sm:$0xff]
    %v67 = vld [vmem:[#allocation4 + $0x70] sm:$0xff]
    %v68 = vld [vmem:[#allocation4 + $0x78] sm:$0xff]
    %v69 = vld [vmem:[#allocation4 + $0x80] sm:$0xff]
    %v70 = vld [vmem:[#allocation4 + $0x88] sm:$0xff]
    %v71 = vld [vmem:[#allocation4 + $0x90] sm:$0xff]
    %v72 = vld [vmem:[#allocation4 + $0x98] sm:$0xff]
    %v73 = vld [vmem:[#allocation4 + $0xa0] sm:$0xff]
    %v74 = vld [vmem:[#allocation4 + $0xa8] sm:$0xff]
    %v75 = vld [vmem:[#allocation4 + $0xb0] sm:$0xff]
    %v76 = vld [vmem:[#allocation4 + $0xb8] sm:$0xff]
    %v77 = vld [vmem:[#allocation4 + $0xc0] sm:$0xff]
    %v78 = vld [vmem:[#allocation4 + $0xc8] sm:$0xff]
    %v79 = vld [vmem:[#allocation4 + $0xd0] sm:$0xff]
    %v80 = vld [vmem:[#allocation4 + $0xd8] sm:$0xff]
    %v81 = vld [vmem:[#allocation4 + $0xe0] sm:$0xff]
    %v82 = vld [vmem:[#allocation4 + $0xe8] sm:$0xff]
    %v83 = vld [vmem:[#allocation4 + $0xf0] sm:$0xff]
    %v84 = vld [vmem:[#allocation4 + $0xf8] sm:$0xff]
    %v85 = vld [vmem:[#allocation4 + $0x100] sm:$0xff]
    %v86 = vld [vmem:[#allocation4 + $0x108] sm:$0xff]
    %v87 = vlaneseq
    %v88 = vshrl.u32 %v87, 7
    %v89 = vsub.s32 0, %v88
    %v90 = vrot.slane %v52, %v89
    %vm91 = vcmask 130048
    %v93 = vsel %vm91, %v51, 0
    %95 = vmatprep.subr.mxu0 0.0
    %96 = vmatpush1.msra.mxu0 %v53
    %97 = vmatprep.subr.mxu0 0.0
    %98 = vmatpush1.msra.mxu0 %v54
    %99 = vmatprep.subr.mxu0 0.0
    %100 = vmatpush1.msra.mxu0 0.0
    %101 = vmatprep.subr.mxu0 0.0
    %102 = vmatpush1.msra.mxu0 0.0
    %103 = vmatprep.subr.mxu0 0.0
    %104 = vmatpush1.msra.mxu0 0.0
    %105 = vmatprep.subr.mxu0 0.0
    %106 = vmatpush1.msra.mxu0 0.0
    %107 = vmatprep.subr.mxu0 0.0
    %108 = vmatpush1.msra.mxu0 0.0
    %109 = vmatprep.subr.mxu0 0.0
    %110 = vmatpush1.msra.mxu0 0.0
    %111 = vmatprep.subr.mxu0 0.0
    %112 = vmatpush1.msra.mxu0 0.0
    %113 = vmatprep.subr.mxu0 0.0
    %114 = vmatpush1.msra.mxu0 0.0
    %115 = vmatprep.subr.mxu0 0.0
    %116 = vmatpush1.msra.mxu0 0.0
    %117 = vmatprep.subr.mxu0 0.0
    %118 = vmatpush1.msra.mxu0 0.0
    %119 = vmatprep.subr.mxu0 0.0
    %120 = vmatpush1.msra.mxu0 0.0
    %121 = vmatprep.subr.mxu0 0.0
    %122 = vmatpush1.msra.mxu0 0.0
    %123 = vmatprep.subr.mxu0 0.0
    %124 = vmatpush1.msra.mxu0 0.0
    %125 = vmatprep.subr.mxu0 0.0
    %126 = vmatpush1.msra.mxu0 0.0
    %127 = vmatprep.subr.mxu0 0.0
    %128 = vmatpush1.msra.mxu0 0.0
    %129 = vmatprep.subr.mxu0 0.0
    %130 = vmatpush1.msra.mxu0 0.0
    %131 = vmatprep.subr.mxu0 0.0
    %132 = vmatpush1.msra.mxu0 0.0
    %133 = vmatprep.subr.mxu0 0.0
    %134 = vmatpush1.msra.mxu0 0.0
    %135 = vmatprep.subr.mxu0 0.0
    %136 = vmatpush1.msra.mxu0 0.0
    %137 = vmatprep.subr.mxu0 0.0
    %138 = vmatpush1.msra.mxu0 0.0
    %139 = vmatprep.subr.mxu0 0.0
    %140 = vmatpush1.msra.mxu0 0.0
    %141 = vmatprep.subr.mxu0 0.0
    %142 = vmatpush1.msra.mxu0 0.0
    %143 = vmatprep.subr.mxu0 0.0
    %144 = vmatpush1.msra.mxu0 0.0
    %145 = vmatprep.subr.mxu0 0.0
    %146 = vmatpush1.msra.mxu0 0.0
    %147 = vmatprep.subr.mxu0 0.0
    %148 = vmatpush1.msra.mxu0 0.0
    %149 = vmatprep.subr.mxu0 0.0
    %150 = vmatpush1.msra.mxu0 0.0
    %151 = vmatprep.subr.mxu0 0.0
    %152 = vmatpush1.msra.mxu0 0.0
    %153 = vmatprep.subr.mxu0 0.0
    %154 = vmatpush1.msra.mxu0 0.0
    %155 = vmatprep.subr.mxu0 0.0
    %156 = vmatpush1.msra.mxu0 0.0
    %157 = vmatprep.subr.mxu0 0.0
    %158 = vmatpush1.msra.mxu0 0.0
    %159 = vmatprep.mubr.f32.mxu0 0.0
    %160 = vmatmul.mubr.f32.gmra.mrb[0].mxu0 %v93
    %v161 = vpop.f32.mrb[0].mxu0
    %v162 = vadd.f32 %v90, %v161
    %v163 = vpop.f32.mrb[0].mxu0
    %164 = vdwg.mxu0
    %v165 = vmax.f32 %v162, 0.0
    %v166 = vrot.slane %v165, 4
    %v167 = vadd.f32 %v165, %v166
    %v168 = vrot.slane %v167, 2
    %v169 = vadd.f32 %v167, %v168
    %v170 = vrot.slane %v169, 1
    %v171 = vadd.f32 %v169, %v170
    %v172 = vmul.f32 %v171, 0.125
    %v173 = vsub.f32 %v165, %v172
    %v174 = vmul.f32 %v173, %v173
    %v175 = vrot.slane %v174, 4
    %v176 = vadd.f32 %v174, %v175
    %v177 = vrot.slane %v176, 2
    %v178 = vadd.f32 %v176, %v177
    %v179 = vrot.slane %v178, 1
    %v180 = vadd.f32 %v178, %v179
    %v181 = vmul.f32 %v180, 0.125
    %v182 = vadd.f32 %v181, 1e-05
    %v183 = vrsqrt.pop %v182
    %v184 = vmul.f32 %v52, %v183
    %v185 = vlaneseq
    %v186 = vshrl.u32 %v185, 7
    %v187 = vsub.s32 1, %v186
    %v188 = vrot.slane %v184, %v187
    %v189 = vmul.f32 %v173, %v188
    %v190 = vlaneseq
    %v191 = vshrl.u32 %v190, 7
    %v192 = vsub.s32 2, %v191
    %v193 = vrot.slane %v52, %v192
    %v194 = vadd.f32 %v189, %v193
    %v195 = vlaneseq
    %v196 = vshrl.u32 %v195, 7
    %v197 = vsub.s32 3, %v196
    %v198 = vrot.slane %v52, %v197
    %199 = vmatprep.subr.mxu0 0.0
    %200 = vmatpush1.msra.mxu0 %v55
    %201 = vmatprep.subr.mxu0 0.0
    %202 = vmatpush1.msra.mxu0 %v56
    %203 = vmatprep.subr.mxu0 0.0
    %204 = vmatpush1.msra.mxu0 %v57
    %205 = vmatprep.subr.mxu0 0.0
    %206 = vmatpush1.msra.mxu0 %v58
    %207 = vmatprep.subr.mxu0 0.0
    %208 = vmatpush1.msra.mxu0 %v59
    %209 = vmatprep.subr.mxu0 0.0
    %210 = vmatpush1.msra.mxu0 %v60
    %211 = vmatprep.subr.mxu0 0.0
    %212 = vmatpush1.msra.mxu0 %v61
    %213 = vmatprep.subr.mxu0 0.0
    %214 = vmatpush1.msra.mxu0 %v62
    %215 = vmatprep.subr.mxu0 0.0
    %216 = vmatpush1.msra.mxu0 %v63
    %217 = vmatprep.subr.mxu0 0.0
    %218 = vmatpush1.msra.mxu0 %v64
    %219 = vmatprep.subr.mxu0 0.0
    %220 = vmatpush1.msra.mxu0 %v65
    %221 = vmatprep.subr.mxu0 0.0
    %222 = vmatpush1.msra.mxu0 %v66
    %223 = vmatprep.subr.mxu0 0.0
    %224 = vmatpush1.msra.mxu0 %v67
    %225 = vmatprep.subr.mxu0 0.0
    %226 = vmatpush1.msra.mxu0 %v68
    %227 = vmatprep.subr.mxu0 0.0
    %228 = vmatpush1.msra.mxu0 %v69
    %229 = vmatprep.subr.mxu0 0.0
    %230 = vmatpush1.msra.mxu0 %v70
    %231 = vmatprep.subr.mxu0 0.0
    %232 = vmatpush1.msra.mxu0 0.0
    %233 = vmatprep.subr.mxu0 0.0
    %234 = vmatpush1.msra.mxu0 0.0
    %235 = vmatprep.subr.mxu0 0.0
    %236 = vmatpush1.msra.mxu0 0.0
    %237 = vmatprep.subr.mxu0 0.0
    %238 = vmatpush1.msra.mxu0 0.0
    %239 = vmatprep.subr.mxu0 0.0
    %240 = vmatpush1.msra.mxu0 0.0
    %241 = vmatprep.subr.mxu0 0.0
    %242 = vmatpush1.msra.mxu0 0.0
    %243 = vmatprep.subr.mxu0 0.0
    %244 = vmatpush1.msra.mxu0 0.0
    %245 = vmatprep.subr.mxu0 0.0
    %246 = vmatpush1.msra.mxu0 0.0
    %247 = vmatprep.subr.mxu0 0.0
    %248 = vmatpush1.msra.mxu0 0.0
    %249 = vmatprep.subr.mxu0 0.0
    %250 = vmatpush1.msra.mxu0 0.0
    %251 = vmatprep.subr.mxu0 0.0
    %252 = vmatpush1.msra.mxu0 0.0
    %253 = vmatprep.subr.mxu0 0.0
    %254 = vmatpush1.msra.mxu0 0.0
    %255 = vmatprep.subr.mxu0 0.0
    %256 = vmatpush1.msra.mxu0 0.0
    %257 = vmatprep.subr.mxu0 0.0
    %258 = vmatpush1.msra.mxu0 0.0
    %259 = vmatprep.subr.mxu0 0.0
    %260 = vmatpush1.msra.mxu0 0.0
    %261 = vmatprep.subr.mxu0 0.0
    %262 = vmatpush1.msra.mxu0 0.0
    %263 = vmatprep.mubr.f32.mxu0 0.0
    %264 = vmatmul.mubr.f32.gmra.mrb[0].mxu0 %v194
    %v265 = vpop.f32.mrb[0].mxu0
    %v266 = vadd.f32 %v198, %v265
    %v267 = vpop.f32.mrb[0].mxu0
    %268 = vdwg.mxu0
    %v269 = vmax.f32 %v266, 0.0
    %v270 = vrot.slane %v269, 4
    %v271 = vadd.f32 %v269, %v270
    %v272 = vrot.slane %v271, 2
    %v273 = vadd.f32 %v271, %v272
    %v274 = vrot.slane %v273, 1
    %v275 = vadd.f32 %v273, %v274
    %v276 = vmul.f32 %v275, 0.125
    %v277 = vsub.f32 %v269, %v276
    %v278 = vmul.f32 %v277, %v277
    %v279 = vrot.slane %v278, 4
    %v280 = vadd.f32 %v278, %v279
    %v281 = vrot.slane %v280, 2
    %v282 = vadd.f32 %v280, %v281
    %v283 = vrot.slane %v282, 1
    %v284 = vadd.f32 %v282, %v283
    %v285 = vmul.f32 %v284, 0.125
    %v286 = vadd.f32 %v285, 1e-05
    %v287 = vrsqrt.pop %v286
    %v288 = vmul.f32 %v52, %v287
    %v289 = vlaneseq
    %v290 = vshrl.u32 %v289, 7
    %v291 = vsub.s32 4, %v290
    %v292 = vrot.slane %v288, %v291
    %v293 = vmul.f32 %v277, %v292
    %v294 = vlaneseq
    %v295 = vshrl.u32 %v294, 7
    %v296 = vsub.s32 5, %v295
    %v297 = vrot.slane %v52, %v296
    %v298 = vadd.f32 %v293, %v297
    %v299 = vlaneseq
    %v300 = vshrl.u32 %v299, 7
    %v301 = vsub.s32 6, %v300
    %v302 = vrot.slane %v52, %v301
    %303 = vmatprep.subr.mxu0 0.0
    %304 = vmatpush1.msra.mxu0 %v71
    %305 = vmatprep.subr.mxu0 0.0
    %306 = vmatpush1.msra.mxu0 %v72
    %307 = vmatprep.subr.mxu0 0.0
    %308 = vmatpush1.msra.mxu0 %v73
    %309 = vmatprep.subr.mxu0 0.0
    %310 = vmatpush1.msra.mxu0 %v74
    %311 = vmatprep.subr.mxu0 0.0
    %312 = vmatpush1.msra.mxu0 %v75
    %313 = vmatprep.subr.mxu0 0.0
    %314 = vmatpush1.msra.mxu0 %v76
    %315 = vmatprep.subr.mxu0 0.0
    %316 = vmatpush1.msra.mxu0 %v77
    %317 = vmatprep.subr.mxu0 0.0
    %318 = vmatpush1.msra.mxu0 %v78
    %319 = vmatprep.subr.mxu0 0.0
    %320 = vmatpush1.msra.mxu0 %v79
    %321 = vmatprep.subr.mxu0 0.0
    %322 = vmatpush1.msra.mxu0 %v80
    %323 = vmatprep.subr.mxu0 0.0
    %324 = vmatpush1.msra.mxu0 %v81
    %325 = vmatprep.subr.mxu0 0.0
    %326 = vmatpush1.msra.mxu0 %v82
    %327 = vmatprep.subr.mxu0 0.0
    %328 = vmatpush1.msra.mxu0 %v83
    %329 = vmatprep.subr.mxu0 0.0
    %330 = vmatpush1.msra.mxu0 %v84
    %331 = vmatprep.subr.mxu0 0.0
    %332 = vmatpush1.msra.mxu0 %v85
    %333 = vmatprep.subr.mxu0 0.0
    %334 = vmatpush1.msra.mxu0 %v86
    %335 = vmatprep.subr.mxu0 0.0
    %336 = vmatpush1.msra.mxu0 0.0
    %337 = vmatprep.subr.mxu0 0.0
    %338 = vmatpush1.msra.mxu0 0.0
    %339 = vmatprep.subr.mxu0 0.0
    %340 = vmatpush1.msra.mxu0 0.0
    %341 = vmatprep.subr.mxu0 0.0
    %342 = vmatpush1.msra.mxu0 0.0
    %343 = vmatprep.subr.mxu0 0.0
    %344 = vmatpush1.msra.mxu0 0.0
    %345 = vmatprep.subr.mxu0 0.0
    %346 = vmatpush1.msra.mxu0 0.0
    %347 = vmatprep.subr.mxu0 0.0
    %348 = vmatpush1.msra.mxu0 0.0
    %349 = vmatprep.subr.mxu0 0.0
    %350 = vmatpush1.msra.mxu0 0.0
    %351 = vmatprep.subr.mxu0 0.0
    %352 = vmatpush1.msra.mxu0 0.0
    %353 = vmatprep.subr.mxu0 0.0
    %354 = vmatpush1.msra.mxu0 0.0
    %355 = vmatprep.subr.mxu0 0.0
    %356 = vmatpush1.msra.mxu0 0.0
    %357 = vmatprep.subr.mxu0 0.0
    %358 = vmatpush1.msra.mxu0 0.0
    %359 = vmatprep.subr.mxu0 0.0
    %360 = vmatpush1.msra.mxu0 0.0
    %361 = vmatprep.subr.mxu0 0.0
    %362 = vmatpush1.msra.mxu0 0.0
    %363 = vmatprep.subr.mxu0 0.0
    %364 = vmatpush1.msra.mxu0 0.0
    %365 = vmatprep.subr.mxu0 0.0
    %366 = vmatpush1.msra.mxu0 0.0
    %367 = vmatprep.mubr.f32.mxu0 0.0
    %368 = vmatmul.mubr.f32.gmra.mrb[0].mxu0 %v298
    %v369 = vpop.f32.mrb[0].mxu0
    %v370 = vadd.f32 %v302, %v369
    %v371 = vpop.f32.mrb[0].mxu0
    %372 = vdwg.mxu0
    %v373 = vtanh.pop %v370
    %374 = vst [vmem:[%s3] sm:$0xff] %v373
    // Predicated region
    $region26: #{actor_forward.1} parent=1 // pred_check
      _
    $region27: #{actor_forward.1} parent=1 // pred_check_branch
      %376 = sbr.rel (0) target = $region29
    $region28: #{actor_forward.1} parent=1 // pred_region
      _
    $region29: #{actor_forward.1} parent=1 // pred_fallthru
      _
    // Predicated region
    $region30: #{actor_forward.1} parent=1 // pred_check
      _
    $region31: #{actor_forward.1} parent=1 // pred_check_branch
      %378 = sbr.rel (0) target = $region33
    $region32: #{actor_forward.1} parent=1 // pred_region
      _
    $region33: #{actor_forward.1} parent=1 // pred_fallthru
      _
    %379 = vsyncpa [#allocation3], 1
    %380 = vsyncpa [#allocation5], 1

</llo_original>
